<compile_context>
chip_gen: v7x
topology: tpu7x:2x2x1
jax: 0.10.0
libtpu: 0.0.40
codegen_flags: <defaults>
</compile_context>

<pallas_src>
import functools

import jax
import jax.numpy as jnp
from jax.experimental import pallas as pl
from jax.experimental.pallas import tpu as pltpu


def _round_up(x, m):
    return (x + m - 1) // m * m


def _plan(in_f, out_f, tn_max=512, tk_max=512):
    """Lane-dense tile plan shared by Linear.__init__ (pre-pad) and the call."""
    tn = min(tn_max, _round_up(out_f, 128))
    tk = min(tk_max, _round_up(in_f, 128))
    np_ = _round_up(out_f, tn)
    kp = _round_up(in_f, tk)
    return tn, tk, np_, kp


def _vmem_limit_bytes():
    """Generation-aware scoped-VMEM budget (~3/4 physical, capped at 64 MiB)."""
    cap = 128 << 20
    try:
        cap = getattr(pltpu.get_tpu_info(), "vmem_capacity_bytes", cap)
    except Exception:
        pass
    return max(32 << 20, min(cap * 3 // 4, 64 << 20))


# ----------------------------- Pallas kernels ------------------------------

def _linear_kernel(x_ref, w_ref, b_ref, o_ref, acc_ref, *, apply_relu,
                   compute_dtype):
    """One (tm, tn) output tile, accumulated over the K grid axis."""
    k = pl.program_id(2)

    # Cast x in-kernel (hides under the MXU); weight is pre-cast to bf16.
    partial = jnp.dot(x_ref[...].astype(compute_dtype), w_ref[...],
                      preferred_element_type=jnp.float32)

    @pl.when(k == 0)
    def _():
        acc_ref[...] = partial          # no zero-fill + read-add on first step

    @pl.when(k != 0)
    def _():
        acc_ref[...] += partial

    @pl.when(k == pl.num_programs(2) - 1)
    def _():
        y = acc_ref[...] + b_ref[...]   # bias already f32
        if apply_relu:                  # fused epilogue, dtype-matched zero
            y = jnp.maximum(y, jnp.zeros((), y.dtype))
        o_ref[...] = y.astype(o_ref.dtype)


def _linear_kernel_single_k(x_ref, w_ref, b_ref, o_ref, *, apply_relu,
                            compute_dtype):
    """Fast path when the whole K dimension fits one tile: no scratch/accum."""
    y = jnp.dot(x_ref[...].astype(compute_dtype), w_ref[...],
                preferred_element_type=jnp.float32) + b_ref[...]
    if apply_relu:
        y = jnp.maximum(y, jnp.zeros((), y.dtype))
    o_ref[...] = y.astype(o_ref.dtype)


def pallas_linear(x, w_p, b_p, out_f, *, tn, tk, apply_relu=False,
                  compute_dtype=jnp.bfloat16, tm_max=512):
    """y = x @ W + b with a pre-padded/pre-cast weight.

    x: (batch, in_f) f32.  w_p: (kp, np_) bf16, zero-padded.  b_p: (1, np_) f32.
    Returns (batch, out_f) in x.dtype.
    """
    batch, in_f = x.shape
    kp, np_ = w_p.shape
    assert kp % tk == 0 and np_ % tn == 0 and in_f <= kp and out_f <= np_
    assert b_p.shape == (1, np_)
    out_dtype = x.dtype

    # bf16 packs 16 rows per vreg -> align tm to 16 when batch > 8.
    m_align = 16 if batch > 8 else 8
    tm = min(tm_max, _round_up(batch, m_align))
    mp = _round_up(batch, tm)

    # Megacore: guarantee >= 2 parallel (M x N) iterations so both v7x
    # TensorCores get work when the problem fits a single tile.
    if (mp // tm) * (np_ // tn) == 1 and np_ // 128 >= 2:
        tn = np_ // 2 if (np_ // 2) % 128 == 0 else 128

    # Pad x only when its shape is not already tile-aligned (weight pad rows
    # are zero, so the extra K columns of x never change the result).
    if (mp, kp) != (batch, in_f):
        x = jnp.pad(x, ((0, mp - batch), (0, kp - in_f)))

    n_k = kp // tk
    grid_m, grid_n = mp // tm, np_ // tn
    vmem_limit = _vmem_limit_bytes()

    if n_k == 1:
        out = pl.pallas_call(
            functools.partial(_linear_kernel_single_k, apply_relu=apply_relu,
                              compute_dtype=compute_dtype),
            out_shape=jax.ShapeDtypeStruct((mp, np_), out_dtype),
            grid=(grid_m, grid_n),
            in_specs=[
                pl.BlockSpec((tm, kp), lambda i, j: (i, 0)),
                pl.BlockSpec((kp, tn), lambda i, j: (0, j)),
                pl.BlockSpec((1, tn), lambda i, j: (0, j)),
            ],
            out_specs=pl.BlockSpec((tm, tn), lambda i, j: (i, j)),
            compiler_params=pltpu.CompilerParams(
                dimension_semantics=("parallel", "parallel"),
                vmem_limit_bytes=vmem_limit),
        )(x, w_p, b_p)
    else:
        out = pl.pallas_call(
            functools.partial(_linear_kernel, apply_relu=apply_relu,
                              compute_dtype=compute_dtype),
            out_shape=jax.ShapeDtypeStruct((mp, np_), out_dtype),
            grid_spec=pltpu.PrefetchScalarGridSpec(
                num_scalar_prefetch=0,
                grid=(grid_m, grid_n, n_k),
                in_specs=[
                    pl.BlockSpec((tm, tk), lambda i, j, k: (i, k)),
                    pl.BlockSpec((tk, tn), lambda i, j, k: (k, j)),
                    pl.BlockSpec((1, tn), lambda i, j, k: (0, j)),
                ],
                out_specs=pl.BlockSpec((tm, tn), lambda i, j, k: (i, j)),
                scratch_shapes=[pltpu.VMEM((tm, tn), jnp.float32)],
            ),
            compiler_params=pltpu.CompilerParams(
                dimension_semantics=("parallel", "parallel", "arbitrary"),
                vmem_limit_bytes=vmem_limit),
        )(x, w_p, b_p)

    if (mp, np_) != (batch, out_f):
        out = out[:batch, :out_f]
    return out


def _relu_kernel(x_ref, o_ref):
    o_ref[...] = jnp.maximum(x_ref[...], jnp.zeros((), x_ref.dtype))


def pallas_relu(x):
    """Elementwise ReLU.  Tiled with lane-dense blocks when shapes allow;
    small/awkward shapes fall back to a single-block call.  Only reached when
    ReLU is used standalone — Sequential.forward never gets here."""
    if x.ndim >= 2:
        orig_shape = x.shape
        x2 = x.reshape(-1, x.shape[-1])
        rows, cols = x2.shape
        br = min(512, rows)
        bc = min(512, cols)
        tile_ok = (rows % br == 0 and cols % bc == 0
                   and (br % 8 == 0 or br == rows)
                   and (bc % 128 == 0 or bc == cols))
        if tile_ok:
            out = pl.pallas_call(
                _relu_kernel,
                out_shape=jax.ShapeDtypeStruct((rows, cols), x.dtype),
                grid=(rows // br, cols // bc),
                in_specs=[pl.BlockSpec((br, bc), lambda i, j: (i, j))],
                out_specs=pl.BlockSpec((br, bc), lambda i, j: (i, j)),
                compiler_params=pltpu.CompilerParams(
                    dimension_semantics=("parallel", "parallel"),
                    vmem_limit_bytes=_vmem_limit_bytes()),
            )(x2)
            return out.reshape(orig_shape)
    return pl.pallas_call(
        _relu_kernel,
        out_shape=jax.ShapeDtypeStruct(x.shape, x.dtype),
    )(x)


# --------------------------- Module containers -----------------------------

class Module:
    def __init__(self):
        self.training = True

    def __call__(self, *args, **kwargs):
        return self.forward(*args, **kwargs)

    def forward(self, *args, **kwargs):
        pass


class Linear(Module):
    def __init__(self, in_features, out_features, key, *,
                 compute_dtype=jnp.bfloat16, tn_max=512, tk_max=512):
        super().__init__()
        k_w, k_b = jax.random.split(key)
        bound = 1.0 / jnp.sqrt(jnp.float32(in_features))
        # torch.nn.Linear-style init; weight stored transposed so the kernel
        # computes x @ W + b directly.
        self.weight = jax.random.uniform(
            k_w, (in_features, out_features), jnp.float32, -bound, bound)
        self.bias = jax.random.uniform(
            k_b, (out_features,), jnp.float32, -bound, bound)
        self.in_features = in_features
        self.out_features = out_features
        self._compute_dtype = compute_dtype

        # Pre-pad + pre-cast ONCE (not per forward call): bf16 weight, f32 bias,
        # lane-dense padded sizes shared with pallas_linear.
        tn, tk, np_, kp = _plan(in_features, out_features, tn_max, tk_max)
        self._tn, self._tk = tn, tk
        self._w_packed = jnp.pad(
            self.weight,
            ((0, kp - in_features), (0, np_ - out_features))).astype(compute_dtype)
        self._b_packed = jnp.pad(
            self.bias, (0, np_ - out_features)).astype(jnp.float32).reshape(1, np_)

    def forward(self, x):
        return pallas_linear(x, self._w_packed, self._b_packed,
                             self.out_features, tn=self._tn, tk=self._tk,
                             compute_dtype=self._compute_dtype)


class ReLU(Module):
    def forward(self, x):
        return pallas_relu(x)


class Sequential(Module):
    def __init__(self, *modules):
        super().__init__()
        self.modules = modules

    def forward(self, x):
        # Exact replica of the reference: returns after the FIRST module;
        # an empty Sequential falls through and returns None.
        for module in self.modules:
            x = module(x)
            return x


# --------------------------------- main ------------------------------------

if __name__ == "__main__":
    key = jax.random.PRNGKey(0)
    ks = jax.random.split(key, 6)

    # 1) Sequential demo (Linear, ReLU).  Reference semantics: only the FIRST
    #    module runs, so the output equals Linear(x) (no ReLU applied).
    batch, hidden, out = 8, 128, 256
    x = jax.random.normal(ks[0], (batch, hidden), jnp.float32)
    model = Sequential(Linear(hidden, out, ks[1]), ReLU())
    y = jax.block_until_ready(model(x))
    assert y.shape == (batch, out)

    lin = model.modules[0]
    y_ref = jnp.dot(x.astype(jnp.bfloat16), lin.weight.astype(jnp.bfloat16),
                    preferred_element_type=jnp.float32) + lin.bias
    assert jnp.allclose(y, y_ref, atol=1e-2, rtol=1e-2)

    # Empty Sequential returns None (reference quirk).
    assert Sequential()(x) is None

    # 2) Padding path (non-(8,128)-aligned shapes).
    b2, h2, o2 = 5, 32, 48
    x2 = jax.random.normal(ks[2], (b2, h2), jnp.float32)
    lin2 = Linear(h2, o2, ks[3])
    y2 = jax.block_until_ready(lin2(x2))
    y2_ref = jnp.dot(x2.astype(jnp.bfloat16), lin2.weight.astype(jnp.bfloat16),
                     preferred_element_type=jnp.float32) + lin2.bias
    assert y2.shape == (b2, o2)
    assert jnp.allclose(y2, y2_ref, atol=1e-2, rtol=1e-2)

    # 3) Multi-K-step path (exercises the accumulator kernel).
    b3, h3, o3 = 16, 640, 256
    x3 = jax.random.normal(ks[4], (b3, h3), jnp.float32)
    lin3 = Linear(h3, o3, ks[5])
    y3 = jax.block_until_ready(lin3(x3))
    y3_ref = jnp.dot(x3.astype(jnp.bfloat16), lin3.weight.astype(jnp.bfloat16),
                     preferred_element_type=jnp.float32) + lin3.bias
    assert y3.shape == (b3, o3)
    assert jnp.allclose(y3, y3_ref, atol=1e-2, rtol=1e-2)

    # 4) Standalone tiled ReLU kernel (never reached via Sequential.forward).
    r = jax.block_until_ready(pallas_relu(y))
    assert jnp.allclose(r, jnp.maximum(y, 0.0))

    print("KERNEL_OK")
</pallas_src>

<mosaic_0001>
module attributes {stable_mosaic.version = 11 : i64} {
  func.func @_linear_kernel_single_k(%arg0: i32, %arg1: i32, %arg2: memref<8x128xf32, #tpu.memory_space<vmem>>, %arg3: memref<128x128xbf16, #tpu.memory_space<vmem>>, %arg4: memref<1x128xf32, #tpu.memory_space<vmem>>, %arg5: memref<8x128xf32, #tpu.memory_space<vmem>>) attributes {dimension_semantics = [#tpu.dimension_semantics<parallel>, #tpu.dimension_semantics<parallel>], iteration_bounds = array<i64: 1, 2>, scalar_prefetch = 0 : i64, scratch_operands = 0 : i64, tpu.core_type = #tpu.core_type<tc>, window_params = [{transform_indices = @transform_0, window_bounds = array<i64: 8, 128>}, {transform_indices = @transform_1, window_bounds = array<i64: 128, 128>}, {transform_indices = @transform_2, window_bounds = array<i64: 1, 128>}, {transform_indices = @transform_3, window_bounds = array<i64: 8, 128>}]} {
    %c0 = arith.constant 0 : index
    %c0_0 = arith.constant 0 : index
    %0 = vector.load %arg2[%c0, %c0_0] : memref<8x128xf32, #tpu.memory_space<vmem>>, vector<8x128xf32>
    %1 = arith.truncf %0 : vector<8x128xf32> to vector<8x128xbf16>
    %c0_1 = arith.constant 0 : index
    %c0_2 = arith.constant 0 : index
    %2 = vector.load %arg3[%c0_1, %c0_2] : memref<128x128xbf16, #tpu.memory_space<vmem>>, vector<128x128xbf16>
    %cst = arith.constant dense<0.000000e+00> : vector<8x128xf32>
    %3 = tpu.matmul %1, %2, %cst {dimension_numbers = #tpu.dot_dimension_numbers<[1], [0], [0], [1], [0, 0, 1, 1], [], []>} : vector<8x128xbf16>, vector<128x128xbf16>, vector<8x128xf32> -> vector<8x128xf32>
    %c0_3 = arith.constant 0 : index
    %c0_4 = arith.constant 0 : index
    %4 = vector.load %arg4[%c0_3, %c0_4] : memref<1x128xf32, #tpu.memory_space<vmem>>, vector<1x128xf32>
    %5 = vector.broadcast %4 : vector<1x128xf32> to vector<8x128xf32>
    %6 = arith.addf %3, %5 : vector<8x128xf32>
    %c0_5 = arith.constant 0 : index
    %c0_6 = arith.constant 0 : index
    %7 = vector.load %arg5[%c0_5, %c0_6] : memref<8x128xf32, #tpu.memory_space<vmem>>, vector<8x128xf32>
    tpu.vector_store %arg5[%c0_5, %c0_6], %6 {strides = array<i32>} : memref<8x128xf32, #tpu.memory_space<vmem>>, vector<8x128xf32>,
    return
  }
  func.func @transform_0(%arg0: i32, %arg1: i32) -> (i32, i32) {
    %c0_i32 = arith.constant 0 : i32
    %c0_i32_0 = arith.constant 0 : i32
    return %arg0, %c0_i32 : i32, i32
  }
  func.func @transform_1(%arg0: i32, %arg1: i32) -> (i32, i32) {
    %c0_i32 = arith.constant 0 : i32
    %c0_i32_0 = arith.constant 0 : i32
    return %c0_i32, %arg1 : i32, i32
  }
  func.func @transform_2(%arg0: i32, %arg1: i32) -> (i32, i32) {
    %c0_i32 = arith.constant 0 : i32
    %c0_i32_0 = arith.constant 0 : i32
    return %c0_i32, %arg1 : i32, i32
  }
  func.func @transform_3(%arg0: i32, %arg1: i32) -> (i32, i32) {
    %c0_i32 = arith.constant 0 : i32
    return %arg0, %arg1 : i32, i32
  }
}

</mosaic_0001>

<llo_original>
// kernel: tpu_custom_call.1
$region0: #{tpu_custom_call.1}
  #allocation0 [shape = 'u32[]', space=smem, size = 0x4, offset = 0x4, fixed_abs, tag = 'smem constant byte address 0x4 - core index']
  #allocation1 [shape = 'u32[144,128]{1,0:T(1,128)}', space=vmem, size = 0x12000, scoped, tag = 'internal scratch']
  %s0 = inlined_call_operand.hbm [shape: f32[8,128], index: 0, kind: input, shape index: {}]
  %s1 = inlined_call_operand.hbm [shape: bf16[128,256], index: 1, kind: input, shape index: {}]
  %s2 = inlined_call_operand.hbm [shape: f32[1,256], index: 2, kind: input, shape index: {}]
  %s3 = inlined_call_operand.hbm [shape: f32[8,256], index: 3, kind: output, shape index: {}]
  %s4 = sld [smem:[#allocation0]]
  $region57: #{tpu_custom_call.1} parent=0
    _
  %s6 = ssub.s32 1, %s4
  %s7 = scalar_select 0, %s6, %s4
  $region1: #{tpu_custom_call.1} parent=0
    #allocation2 [shape = 'u8[4096]{0}', space=vmem, size = 0x1000, scoped, tag = 'input window, operand 0, single buffered']
    #allocation3 [shape = 's32[2]{0}', space=sflag, size = 0x8, scoped, tag = 'scoped memory for tpu_custom_call.1']
    #allocation4 [shape = 's32[2]{0}', space=sflag, size = 0x8, scoped, tag = 'scoped memory for tpu_custom_call.1']
    #allocation5 [shape = 'u8[65536]{0}', space=vmem, size = 0x10000, scoped, tag = 'input window, operand 1']
    #allocation6 [shape = 's32[2]{0}', space=sflag, size = 0x8, scoped, tag = 'scoped memory for tpu_custom_call.1']
    #allocation7 [shape = 'u8[1024]{0}', space=vmem, size = 0x400, scoped, tag = 'input window, operand 2']
    #allocation8 [shape = 'u8[8192]{0}', space=vmem, size = 0x2000, scoped, tag = 'output window, operand 0']
    %8 = vsyncpa [#allocation3], 0
    %9 = vsyncpa [#allocation6], 0
    %s10 = scalar_lea.sflag [#allocation6], 1
    %11 = vsyncpa %s10, 0
    %12 = vsyncpa [#allocation4], 0
    %s13 = scalar_lea.sflag [#allocation4], 1
    %14 = vsyncpa %s13, 0
    loop: start=0, step=1, limit=4
    $region2: #{tpu_custom_call.1} parent=1 // loop_pre_header
      _
    $region3: #{tpu_custom_call.1} parent=1 // loop_header
      %s16 = sphi 0, %s20
      %p17 = scmp.ge.s32.totalorder %s16, 4
      %s23 = sphi 0, %s35
      %s24 = sphi 0, %s31
      %s25 = sphi 0, %s23
      %s26 = sphi 0, %s24
      %s27 = sphi 0, %s25
      %s28 = sphi 0, %s26
      %s38 = sphi 0, %s40
      %s41 = sphi 0, %s38
      %s42 = sphi 0, %s41
      %s58 = sphi 0, %s42
      %s64 = sphi 0, %s66
      %s67 = sphi 0, %s64
      %s68 = sphi 0, %s67
      %s84 = sphi 0, %s68
      %s90 = sphi 0, %s92
      %s93 = sphi 0, %s90
      %s94 = sphi 0, %s93
      %s110 = sphi 0, %s94
      %s118 = sphi 0, %s120
      %s121 = sphi 0, %s118
      %s122 = sphi 0, %s121
      %s138 = sphi 0, %s122
    $region4: #{tpu_custom_call.1} parent=1 // loop_header_branch
      %19 = sbr.rel (%p17) target = $region8
    $region5: #{tpu_custom_call.1} parent=1 // loop_body
      %s21 = ssub.s32 %s16, 1
      %s22 = ssub.s32 %s16, 2
      %s29 = sadd.s32 1, %s24
      %p30 = scmp.ge.s32.totalorder %s29, 2
      %s31 = scalar_select %p30, 0, %s29
      %s32 = sadd.s32 1, %s23
      %s33 = scalar_select %p30, %s32, %s23
      %p34 = scmp.ge.s32.totalorder %s33, 1
      %s35 = scalar_select %p34, 0, %s33
      %s36 = ssub.s32 %s23, %s35
      %p37 = scmp.eq.s32.totalorder %s36, 0
      %s39 = sadd.s32 %s38, 1
      %s40 = scalar_select %p37, %s38, %s39
      %p43 = pneg %p37
      %p44 = scmp.eq.s32.totalorder %s16, 1
      %p45 = por %p43, %p44
      %p46 = scmp.ne.s32.totalorder %s38, %s41
      %p47 = scmp.eq.s32.totalorder %s16, 0
      %p48 = por %p46, %p47
      %p49 = scmp.ne.s32.totalorder %s38, %s41
      %p50 = scmp.eq.s32.totalorder %s21, 1
      %p51 = por %p49, %p50
      %p52 = scmp.ne.s32.totalorder %s41, %s42
      %p53 = scmp.eq.s32.totalorder %s21, 0
      %p54 = por %p52, %p53
      %p55 = scmp.ne.s32.totalorder %s41, %s42
      %p56 = scmp.eq.s32.totalorder %s22, 1
      %p57 = por %p55, %p56
      %p59 = scmp.ne.s32.totalorder %s42, %s58
      %p60 = scmp.eq.s32.totalorder %s22, 0
      %p61 = por %p59, %p60
      %s62 = ssub.s32 %s24, %s31
      %p63 = scmp.eq.s32.totalorder %s62, 0
      %s65 = sadd.s32 %s64, 1
      %s66 = scalar_select %p63, %s64, %s65
      %p69 = pneg %p63
      %p70 = scmp.eq.s32.totalorder %s16, 1
      %p71 = por %p69, %p70
      %p72 = scmp.ne.s32.totalorder %s64, %s67
      %p73 = scmp.eq.s32.totalorder %s16, 0
      %p74 = por %p72, %p73
      %p75 = scmp.ne.s32.totalorder %s64, %s67
      %p76 = scmp.eq.s32.totalorder %s21, 1
      %p77 = por %p75, %p76
      %p78 = scmp.ne.s32.totalorder %s67, %s68
      %p79 = scmp.eq.s32.totalorder %s21, 0
      %p80 = por %p78, %p79
      %p81 = scmp.ne.s32.totalorder %s67, %s68
      %p82 = scmp.eq.s32.totalorder %s22, 1
      %p83 = por %p81, %p82
      %p85 = scmp.ne.s32.totalorder %s68, %s84
      %p86 = scmp.eq.s32.totalorder %s22, 0
      %p87 = por %p85, %p86
      %s88 = ssub.s32 %s24, %s31
      %p89 = scmp.eq.s32.totalorder %s88, 0
      %s91 = sadd.s32 %s90, 1
      %s92 = scalar_select %p89, %s90, %s91
      %p95 = pneg %p89
      %p96 = scmp.eq.s32.totalorder %s16, 1
      %p97 = por %p95, %p96
      %p98 = scmp.ne.s32.totalorder %s90, %s93
      %p99 = scmp.eq.s32.totalorder %s16, 0
      %p100 = por %p98, %p99
      %p101 = scmp.ne.s32.totalorder %s90, %s93
      %p102 = scmp.eq.s32.totalorder %s21, 1
      %p103 = por %p101, %p102
      %p104 = scmp.ne.s32.totalorder %s93, %s94
      %p105 = scmp.eq.s32.totalorder %s21, 0
      %p106 = por %p104, %p105
      %p107 = scmp.ne.s32.totalorder %s93, %s94
      %p108 = scmp.eq.s32.totalorder %s22, 1
      %p109 = por %p107, %p108
      %p111 = scmp.ne.s32.totalorder %s94, %s110
      %p112 = scmp.eq.s32.totalorder %s22, 0
      %p113 = por %p111, %p112
      %s114 = ssub.s32 %s23, %s35
      %s115 = ssub.s32 %s24, %s31
      %s116 = sor.u32 %s114, %s115
      %p117 = scmp.eq.s32.totalorder %s116, 0
      %s119 = sadd.s32 %s118, 1
      %s120 = scalar_select %p117, %s118, %s119
      %p123 = pneg %p117
      %p124 = scmp.eq.s32.totalorder %s16, 1
      %p125 = por %p123, %p124
      %p126 = scmp.ne.s32.totalorder %s118, %s121
      %p127 = scmp.eq.s32.totalorder %s16, 0
      %p128 = por %p126, %p127
      %p129 = scmp.ne.s32.totalorder %s118, %s121
      %p130 = scmp.eq.s32.totalorder %s21, 1
      %p131 = por %p129, %p130
      %p132 = scmp.ne.s32.totalorder %s121, %s122
      %p133 = scmp.eq.s32.totalorder %s21, 0
      %p134 = por %p132, %p133
      %p135 = scmp.ne.s32.totalorder %s121, %s122
      %p136 = scmp.eq.s32.totalorder %s22, 1
      %p137 = por %p135, %p136
      %p139 = scmp.ne.s32.totalorder %s122, %s138
      %p140 = scmp.eq.s32.totalorder %s22, 0
      %p141 = por %p139, %p140
      %p142 = scmp.le.s32.totalorder 1, %s16
      %p143 = scmp.lt.s32.totalorder %s16, 3
      %p144 = pnand %p142, %p143
      %p145 = pneg %p144
      // Predicated region
      $region9: #{tpu_custom_call.1} parent=5 // pred_check
        _
      $region10: #{tpu_custom_call.1} parent=5 // pred_check_branch
        %147 = sbr.rel (%p144) target = $region12
      $region11: #{tpu_custom_call.1} parent=5 // pred_region
        %s148 = ssub.s32 %s16, 1
        // Predicated region
        $region13: #{tpu_custom_call.1} parent=11 // pred_check
          %p149 = pneg %p54
        $region14: #{tpu_custom_call.1} parent=11 // pred_check_branch
          %151 = sbr.rel (%p149) target = $region16
        $region15: #{tpu_custom_call.1} parent=11 // pred_region
          %s153 = ssub.s32 128, 128
          %154 = vsyncadd [#allocation3], %s153
          %s155 = smul.addr %s25, 128
          %s156 = scalar_lea.hbm %s0, %s155
          %s158 = sshll.u32 [#allocation2], 4
          %s159 = int_to_ptr.vmem [resolvable:$true] %s158
          %161 = dma.hbm_to_vmem [thread:$0]  %s156, 128, %s159, [#allocation3]
        $region16: #{tpu_custom_call.1} parent=11 // pred_fallthru
          _
      $region12: #{tpu_custom_call.1} parent=5 // pred_fallthru
        _
      %p162 = scmp.lt.s32.totalorder %s16, 2
      // Predicated region
      $region17: #{tpu_custom_call.1} parent=5 // pred_check
        %p163 = pneg %p162
      $region18: #{tpu_custom_call.1} parent=5 // pred_check_branch
        %165 = sbr.rel (%p163) target = $region20
      $region19: #{tpu_custom_call.1} parent=5 // pred_region
        // Predicated region
        $region21: #{tpu_custom_call.1} parent=19 // pred_check
          %p166 = pneg %p74
        $region22: #{tpu_custom_call.1} parent=19 // pred_check_branch
          %168 = sbr.rel (%p166) target = $region24
        $region23: #{tpu_custom_call.1} parent=19 // pred_region
          %s169 = sand.u32 %s16, 1
          %s170 = scalar_lea.sflag [#allocation6], %s169
          %s171 = sand.u32 %s64, 1
          %s172 = smul.addr %s171, 64
          %s173 = scalar_lea.vmem [#allocation5], %s172
          %s175 = ssub.s32 1024, 1024
          %176 = vsyncadd %s170, %s175
          %s177 = smul.addr %s24, 64
          %s178 = scalar_lea.hbm %s1, %s177
          %s179 = sshll.u32 %s173, 4
          %s180 = int_to_ptr.vmem [resolvable:$true] %s179
          %185 = dma.hbm_to_vmem [thread:$0]  %s178, 1024, %s180, %s170, 128, 64, 4
        $region24: #{tpu_custom_call.1} parent=19 // pred_fallthru
          _
        // Predicated region
        $region25: #{tpu_custom_call.1} parent=19 // pred_check
          %p186 = pneg %p100
        $region26: #{tpu_custom_call.1} parent=19 // pred_check_branch
          %188 = sbr.rel (%p186) target = $region28
        $region27: #{tpu_custom_call.1} parent=19 // pred_region
          %s189 = sand.u32 %s16, 1
          %s190 = scalar_lea.sflag [#allocation6], %s189
          %s191 = sand.u32 %s90, 1
          %s192 = scalar_lea.vmem [#allocation7], %s191
          %s194 = ssub.s32 16, 16
          %195 = vsyncadd %s190, %s194
          %s196 = smul.addr %s24, 16
          %s197 = scalar_lea.hbm %s2, %s196
          %s199 = sshll.u32 %s192, 4
          %s200 = int_to_ptr.vmem [resolvable:$true] %s199
          %202 = dma.hbm_to_vmem [thread:$0]  %s197, 16, %s200, %s190
        $region28: #{tpu_custom_call.1} parent=19 // pred_fallthru
          _
      $region20: #{tpu_custom_call.1} parent=5 // pred_fallthru
        _
      %p203 = scmp.le.s32.totalorder 1, %s16
      %p204 = scmp.lt.s32.totalorder %s16, 3
      %p205 = pnand %p203, %p204
      %p206 = pneg %p205
      // Predicated region
      $region29: #{tpu_custom_call.1} parent=5 // pred_check
        _
      $region30: #{tpu_custom_call.1} parent=5 // pred_check_branch
        %208 = sbr.rel (%p205) target = $region32
      $region31: #{tpu_custom_call.1} parent=5 // pred_region
        %s209 = ssub.s32 %s16, 1
        // Predicated region
        $region33: #{tpu_custom_call.1} parent=31 // pred_check
          %p210 = pneg %p54
        $region34: #{tpu_custom_call.1} parent=31 // pred_check_branch
          %212 = sbr.rel (%p210) target = $region36
        $region35: #{tpu_custom_call.1} parent=31 // pred_region
          %213 = dma.done [#allocation3], 128
        $region36: #{tpu_custom_call.1} parent=31 // pred_fallthru
          _
        %s214 = sand.u32 %s21, 1
        %s215 = scalar_lea.sflag [#allocation6], %s214
        %s216 = sand.u32 %s67, 1
        %s217 = smul.addr %s216, 64
        %s218 = scalar_lea.vmem [#allocation5], %s217
        // Predicated region
        $region37: #{tpu_custom_call.1} parent=31 // pred_check
          %p219 = pneg %p80
        $region38: #{tpu_custom_call.1} parent=31 // pred_check_branch
          %221 = sbr.rel (%p219) target = $region40
        $region39: #{tpu_custom_call.1} parent=31 // pred_region
          %222 = dma.done %s215, 1024
        $region40: #{tpu_custom_call.1} parent=31 // pred_fallthru
          _
        %s223 = sand.u32 %s21, 1
        %s224 = scalar_lea.sflag [#allocation6], %s223
        %s225 = sand.u32 %s93, 1
        %s226 = scalar_lea.vmem [#allocation7], %s225
        // Predicated region
        $region41: #{tpu_custom_call.1} parent=31 // pred_check
          %p227 = pneg %p106
        $region42: #{tpu_custom_call.1} parent=31 // pred_check_branch
          %229 = sbr.rel (%p227) target = $region44
        $region43: #{tpu_custom_call.1} parent=31 // pred_region
          %230 = dma.done %s224, 16
        $region44: #{tpu_custom_call.1} parent=31 // pred_fallthru
          _
        %p231 = pneg %p54
        %p232 = pneg %p51
        %s233 = sand.u32 %s21, 1
        %s234 = scalar_lea.sflag [#allocation6], %s233
        %s235 = sand.u32 %s67, 1
        %s236 = smul.addr %s235, 64
        %s237 = scalar_lea.vmem [#allocation5], %s236
        %p238 = pneg %p80
        %p239 = pneg %p77
        %s240 = sand.u32 %s21, 1
        %s241 = scalar_lea.sflag [#allocation6], %s240
        %s242 = sand.u32 %s93, 1
        %s243 = scalar_lea.vmem [#allocation7], %s242
        %p244 = pneg %p106
        %p245 = pneg %p103
        %p246 = pneg %p134
        %p247 = pneg %p131
        %s248 = sand.u32 %s121, 1
        %s249 = scalar_lea.sflag [#allocation4], %s248
        %s250 = sand.u32 %s121, 1
        %s251 = smul.addr %s250, 8
        %s252 = scalar_lea.vmem [#allocation8], %s251
        %v254 = vld [vmem:[#allocation2] sm:$0xff]
        %v255 = vpack.c.bf16 %v254, %v254
        %v256 = vld [vmem:[%s218] sm:$0xf]
        %v257 = vld [vmem:[%s218 + $0x4] sm:$0xf]
        %v258 = vld [vmem:[%s218 + $0x8] sm:$0xf]
        %v259 = vld [vmem:[%s218 + $0xc] sm:$0xf]
        %v260 = vld [vmem:[%s218 + $0x10] sm:$0xf]
        %v261 = vld [vmem:[%s218 + $0x14] sm:$0xf]
        %v262 = vld [vmem:[%s218 + $0x18] sm:$0xf]
        %v263 = vld [vmem:[%s218 + $0x1c] sm:$0xf]
        %v264 = vld [vmem:[%s218 + $0x20] sm:$0xf]
        %v265 = vld [vmem:[%s218 + $0x24] sm:$0xf]
        %v266 = vld [vmem:[%s218 + $0x28] sm:$0xf]
        %v267 = vld [vmem:[%s218 + $0x2c] sm:$0xf]
        %v268 = vld [vmem:[%s218 + $0x30] sm:$0xf]
        %v269 = vld [vmem:[%s218 + $0x34] sm:$0xf]
        %v270 = vld [vmem:[%s218 + $0x38] sm:$0xf]
        %v271 = vld [vmem:[%s218 + $0x3c] sm:$0xf]
        %v272 = vld [vmem:[%s226] sm:$0x1]
        %v274 = vlaneseq
        %v275 = vshrl.u32 %v274, 7
        %v276 = vsub.s32 0, %v275
        %v277 = vrot.slane %v272, %v276
        %v295 = vunpack.c.l.b16 %v256
        %v296 = vunpack.c.l.b16 %v257
        %v297 = vunpack.c.l.b16 %v258
        %v298 = vunpack.c.l.b16 %v259
        %v299 = vunpack.c.l.b16 %v260
        %v300 = vunpack.c.l.b16 %v261
        %v301 = vunpack.c.l.b16 %v262
        %v302 = vunpack.c.l.b16 %v263
        %v303 = vunpack.c.l.b16 %v264
        %v304 = vunpack.c.l.b16 %v265
        %v305 = vunpack.c.l.b16 %v266
        %v306 = vunpack.c.l.b16 %v267
        %v307 = vunpack.c.l.b16 %v268
        %v308 = vunpack.c.l.b16 %v269
        %v309 = vunpack.c.l.b16 %v270
        %v310 = vunpack.c.l.b16 %v271
        %v311 = vpack.c.b16 %v296, %v295
        %v312 = vpack.c.b16 %v298, %v297
        %v313 = vpack.c.b16 %v300, %v299
        %v314 = vpack.c.b16 %v302, %v301
        %v315 = vpack.c.b16 %v304, %v303
        %v316 = vpack.c.b16 %v306, %v305
        %v317 = vpack.c.b16 %v308, %v307
        %v318 = vpack.c.b16 %v310, %v309
        %327 = vmatprep.subr.bf16.mxu0 0
        %328 = vmatpush1.bf16.msra.mxu0 %v311
        %329 = vmatprep.subr.bf16.mxu0 0
        %330 = vmatpush1.bf16.msra.mxu0 %v312
        %331 = vmatprep.subr.bf16.mxu0 0
        %332 = vmatpush1.bf16.msra.mxu0 %v313
        %333 = vmatprep.subr.bf16.mxu0 0
        %334 = vmatpush1.bf16.msra.mxu0 %v314
        %335 = vmatprep.subr.bf16.mxu0 0
        %336 = vmatpush1.bf16.msra.mxu0 %v315
        %337 = vmatprep.subr.bf16.mxu0 0
        %338 = vmatpush1.bf16.msra.mxu0 %v316
        %339 = vmatprep.subr.bf16.mxu0 0
        %340 = vmatpush1.bf16.msra.mxu0 %v317
        %341 = vmatprep.subr.bf16.mxu0 0
        %342 = vmatpush1.bf16.msra.mxu0 %v318
        %343 = vmatprep.subr.bf16.mxu0 0
        %344 = vmatpush1.bf16.msra.mxu0 0
        %345 = vmatprep.subr.bf16.mxu0 0
        %346 = vmatpush1.bf16.msra.mxu0 0
        %347 = vmatprep.subr.bf16.mxu0 0
        %348 = vmatpush1.bf16.msra.mxu0 0
        %349 = vmatprep.subr.bf16.mxu0 0
        %350 = vmatpush1.bf16.msra.mxu0 0
        %351 = vmatprep.subr.bf16.mxu0 0
        %352 = vmatpush1.bf16.msra.mxu0 0
        %353 = vmatprep.subr.bf16.mxu0 0
        %354 = vmatpush1.bf16.msra.mxu0 0
        %355 = vmatprep.subr.bf16.mxu0 0
        %356 = vmatpush1.bf16.msra.mxu0 0
        %357 = vmatprep.subr.bf16.mxu0 0
        %358 = vmatpush1.bf16.msra.mxu0 0
        %359 = vmatprep.mubr.bf16.mxu0 0
        %360 = vmatmul.mubr.bf16.gmra.mrb[0].mxu0 %v255
        %v361 = vpop.f32.mrb[0].mxu0
        %v362 = vadd.f32 %v277, %v361
        %v363 = vpop.f32.mrb[0].mxu0
        %v364 = vpop.f32.mrb[0].mxu0
        %v365 = vpop.f32.mrb[0].mxu0
        %366 = vdwg.mxu0
        %367 = vst [vmem:[%s252] sm:$0xff] %v362
        %s368 = sand.u32 %s121, 1
        %s369 = scalar_lea.sflag [#allocation4], %s368
        %s370 = sand.u32 %s121, 1
        %s371 = smul.addr %s370, 8
        %s372 = scalar_lea.vmem [#allocation8], %s371
        // Predicated region
        $region45: #{tpu_custom_call.1} parent=31 // pred_check
          %p373 = pneg %p131
        $region46: #{tpu_custom_call.1} parent=31 // pred_check_branch
          %375 = sbr.rel (%p373) target = $region48
        $region47: #{tpu_custom_call.1} parent=31 // pred_region
          %s377 = ssub.s32 128, 128
          %378 = vsyncadd %s369, %s377
          %s379 = smul.addr %s25, 2
          %s380 = sadd.s32 %s26, %s379
          %s381 = smul.addr %s380, 128
          %s382 = scalar_lea.hbm %s3, %s381
          %s384 = sshll.u32 %s372, 4
          %s385 = int_to_ptr.vmem [resolvable:$true] %s384
          %387 = dma.vmem_to_hbm [thread:$0]  %s385, 128, %s382, %s369
        $region48: #{tpu_custom_call.1} parent=31 // pred_fallthru
          _
      $region32: #{tpu_custom_call.1} parent=5 // pred_fallthru
        _
      %p388 = scmp.le.s32.totalorder 2, %s16
      // Predicated region
      $region49: #{tpu_custom_call.1} parent=5 // pred_check
        %p389 = pneg %p388
      $region50: #{tpu_custom_call.1} parent=5 // pred_check_branch
        %391 = sbr.rel (%p389) target = $region52
      $region51: #{tpu_custom_call.1} parent=5 // pred_region
        %s392 = ssub.s32 %s16, 2
        // Predicated region
        $region53: #{tpu_custom_call.1} parent=51 // pred_check
          %p393 = pneg %p137
        $region54: #{tpu_custom_call.1} parent=51 // pred_check_branch
          %395 = sbr.rel (%p393) target = $region56
        $region55: #{tpu_custom_call.1} parent=51 // pred_region
          %s396 = sand.u32 %s122, 1
          %s397 = scalar_lea.sflag [#allocation4], %s396
          %s398 = sand.u32 %s122, 1
          %s399 = smul.addr %s398, 8
          %s400 = scalar_lea.vmem [#allocation8], %s399
          %401 = dma.done %s397, 128
        $region56: #{tpu_custom_call.1} parent=51 // pred_fallthru
          _
      $region52: #{tpu_custom_call.1} parent=5 // pred_fallthru
        _
    $region6: #{tpu_custom_call.1} parent=1 // loop_footer
      %s20 = sadd.s32 1, %s16
    $region7: #{tpu_custom_call.1} parent=1 // loop_footer_branch
      %15 = sbr.rel target = $region3
    $region8: #{tpu_custom_call.1} parent=1 // loop_exit
      _
    %402 = vsyncpa [#allocation3], 1
    %s403 = scalar_lea.sflag [#allocation3], 1
    %404 = vsyncpa %s403, 1
    %405 = vsyncpa [#allocation6], 1
    %s406 = scalar_lea.sflag [#allocation6], 1
    %407 = vsyncpa %s406, 1
    %408 = vsyncpa [#allocation4], 1
    %s409 = scalar_lea.sflag [#allocation4], 1
    %410 = vsyncpa %s409, 1

</llo_original>
